<compile_context>
chip_gen: v7x
topology: tpu7x:2x2x1
jax: 0.10.0
libtpu: 0.0.40
codegen_flags: <defaults>
</compile_context>

<pallas_src>
import numpy as np
import jax
import jax.numpy as jnp
from jax.experimental import pallas as pl
from jax.experimental.pallas import tpu as pltpu

LANES = 128
EPS = 1e-5


def _round_up(x, m):
    return (x + m - 1) // m * m


def _tpu_defaults():
    """Generation-aware scoped-VMEM limit and row-tile target."""
    cap = 128 * 1024 * 1024
    try:
        info = pltpu.get_tpu_info()
        cap = int(getattr(info, "vmem_capacity_bytes", cap))
    except Exception:
        pass
    vmem_limit = int(min(cap // 2, 64 * 1024 * 1024))      # 32 MiB on v7x
    target_tp = 1024 if cap >= 128 * 1024 * 1024 else 512    # bigger tiles on v5e/v6e
    return vmem_limit, target_tp


def _choose_row_tile(ho, wo, target_p):
    """Row-tile tr dividing ho with tr*wo <= target_p and (tr*wo) % 8 == 0.

    Fallbacks never silently blow the VMEM budget: if no divisor fits the
    target we take the *smallest* legal tile; a single whole-image tile is only
    used when no divisor satisfies the sublane rule (then the full-dim
    exemption of the (8,128) constraint applies)."""
    divs = [tr for tr in range(1, ho + 1) if ho % tr == 0]
    ok = [tr for tr in divs if (tr * wo) % 8 == 0]
    fit = [tr for tr in ok if tr * wo <= target_p]
    if fit:
        return max(fit)
    if ok:
        return min(ok)
    return ho


# ---------------------------------------------------------------------------
# Pass 1: folded-tap conv (one matmul per tile) + running InstanceNorm stats.
# ---------------------------------------------------------------------------
def conv_stats_pallas(xt, w, k, wo, tr, *, vmem_limit):
    """xt: (N, T, tr_in, wp, cin) bf16 halo row-tiles (stride-1 valid conv).
       w : (k*k*cin, cpad)    bf16 tap-major folded weights.
       Returns y (N, P, cpad) bf16 and per-channel running (mean, M2) f32."""
    n, t_tiles, tr_in, wp, cin = xt.shape
    kk = k * k
    K, cpad = w.shape
    assert K == kk * cin
    tp = tr * wo
    p = t_tiles * tp
    inv_tp = 1.0 / float(tp)

    def kernel(x_ref, w_ref, y_ref, mean_ref, m2_ref):
        t = pl.program_id(1)

        x = x_ref[...]                                  # (tr_in, wp, cin) bf16
        if kk == 1:
            xs = x.reshape(tp, K)
        else:
            # In-VMEM im2col: fold all k*k taps into one contraction.
            slabs = [x[i:i + tr, j:j + wo, :] for i in range(k) for j in range(k)]
            xs = jnp.concatenate(slabs, axis=-1).reshape(tp, K)

        acc = jnp.dot(xs, w_ref[...], preferred_element_type=jnp.float32)
        y_ref[...] = acc.astype(y_ref.dtype)            # single bf16 store

        # Per-tile mean / M2, then Chan parallel-variance combine across tiles
        # (numerically robust vs. raw sum / sum-of-squares).
        tile_mean = jnp.sum(acc, axis=0, keepdims=True) * inv_tp     # (1, cpad)
        diff = acc - tile_mean
        tile_m2 = jnp.sum(diff * diff, axis=0, keepdims=True)        # (1, cpad)

        @pl.when(t == 0)
        def _():
            mean_ref[...] = jnp.zeros_like(mean_ref)
            m2_ref[...] = jnp.zeros_like(m2_ref)

        tf = t.astype(jnp.float32)
        w_b = 1.0 / (tf + 1.0)                          # tile_count weight
        mean_old = mean_ref[...]
        delta = tile_mean - mean_old
        mean_ref[...] = mean_old + delta * w_b
        m2_ref[...] = m2_ref[...] + tile_m2 + (delta * delta) * (tf * float(tp) * w_b)

    flops = 2 * n * p * K * cpad
    bytes_accessed = xt.size * 2 + w.size * 2 + n * p * cpad * 2 + 2 * n * cpad * 4

    return pl.pallas_call(
        kernel,
        out_shape=(jax.ShapeDtypeStruct((n, p, cpad), jnp.bfloat16),
                   jax.ShapeDtypeStruct((n, 1, cpad), jnp.float32),
                   jax.ShapeDtypeStruct((n, 1, cpad), jnp.float32)),
        grid=(n, t_tiles),
        in_specs=[
            pl.BlockSpec((None, None, tr_in, wp, cin),
                         lambda i, j: (i, j, 0, 0, 0)),
            pl.BlockSpec((K, cpad), lambda i, j: (0, 0)),
        ],
        out_specs=(pl.BlockSpec((None, tp, cpad), lambda i, j: (i, j, 0)),
                   pl.BlockSpec((None, 1, cpad), lambda i, j: (i, 0, 0)),
                   pl.BlockSpec((None, 1, cpad), lambda i, j: (i, 0, 0))),
        compiler_params=pltpu.CompilerParams(
            dimension_semantics=("parallel", "arbitrary"),
            vmem_limit_bytes=vmem_limit),
        cost_estimate=pl.CostEstimate(flops=int(flops), transcendentals=0,
                                      bytes_accessed=int(bytes_accessed)),
    )(xt, w)


# ---------------------------------------------------------------------------
# Pass 2: InstanceNorm (affine=False) + activation + fused residual add.
# ---------------------------------------------------------------------------
def norm_act_pallas(y, mean, m2, tp, *, act, residual=None, vmem_limit):
    n, p, cpad = y.shape
    t_tiles = p // tp
    inv_p = 1.0 / float(p)
    add_res = residual is not None

    def kernel(*refs):
        if add_res:
            y_ref, mean_ref, m2_ref, r_ref, o_ref = refs
        else:
            y_ref, mean_ref, m2_ref, o_ref = refs
        yt = y_ref[...].astype(jnp.float32)             # (tp, cpad)
        mu = mean_ref[...]                              # (1, cpad)
        var = jnp.maximum(m2_ref[...] * inv_p, 0.0)
        yt = (yt - mu) * jax.lax.rsqrt(var + EPS)
        if act == "relu":
            yt = jnp.maximum(yt, 0.0)
        if add_res:
            yt = yt + r_ref[...].astype(jnp.float32)
        o_ref[...] = yt.astype(o_ref.dtype)

    in_specs = [pl.BlockSpec((None, tp, cpad), lambda i, j: (i, j, 0)),
                pl.BlockSpec((None, 1, cpad), lambda i, j: (i, 0, 0)),
                pl.BlockSpec((None, 1, cpad), lambda i, j: (i, 0, 0))]
    args = [y, mean, m2]
    if add_res:
        in_specs.append(pl.BlockSpec((None, tp, cpad), lambda i, j: (i, j, 0)))
        args.append(residual)

    return pl.pallas_call(
        kernel,
        out_shape=jax.ShapeDtypeStruct((n, p, cpad), jnp.bfloat16),
        grid=(n, t_tiles),
        in_specs=in_specs,
        out_specs=pl.BlockSpec((None, tp, cpad), lambda i, j: (i, j, 0)),
        compiler_params=pltpu.CompilerParams(
            dimension_semantics=("parallel", "parallel"),
            vmem_limit_bytes=vmem_limit),
        cost_estimate=pl.CostEstimate(
            flops=int(7 * n * p * cpad), transcendentals=0,
            bytes_accessed=int((2 + int(add_res) + 1) * n * p * cpad * 2)),
    )(*args)


# ---------------------------------------------------------------------------
# Layer glue: reflect pad + layer-specific re-layout + halo row-tiling.
# ---------------------------------------------------------------------------
def apply_conv_block(x, layer, *, residual=None, target_tp, vmem_limit):
    """x: (N, H, W, Cstore) bf16 NHWC -> (N, Ho, Wo, Cpad) bf16."""
    kind = layer["kind"]
    k = layer["k_eff"]

    if kind == "first7x7":
        # Reflect pad 3, then host im2col (tiny Cin) -> effective 1x1 conv
        # with K = 49*Cin so the MXU sees one well-fed contraction per tile.
        xin = jnp.pad(x, ((0, 0), (3, 3), (3, 3), (0, 0)), mode="reflect")
        n, hp, wpad, c = xin.shape
        ho, wo_ = hp - 6, wpad - 6
        slabs = [jax.lax.slice(xin, (0, di, dj, 0), (n, di + ho, dj + wo_, c))
                 for di in range(7) for dj in range(7)]
        xin = jnp.concatenate(slabs, axis=-1)
    elif kind == "down4x4":
        # Reflect pad 1, slice to real channels, space-to-depth: 4x4/s2 conv
        # becomes a 2x2/s1 conv with 4x longer contraction, no strided slices.
        c = layer["cin_real"]
        xin = jnp.pad(x[..., :c], ((0, 0), (1, 1), (1, 1), (0, 0)), mode="reflect")
        n, hp, wpad, _ = xin.shape
        xin = xin.reshape(n, hp // 2, 2, wpad // 2, 2, c)
        xin = jnp.transpose(xin, (0, 1, 3, 2, 4, 5)).reshape(n, hp // 2, wpad // 2, 4 * c)
    else:  # "res3x3"
        xin = jnp.pad(x, ((0, 0), (1, 1), (1, 1), (0, 0)), mode="reflect")

    xin = xin.astype(jnp.bfloat16)
    n, hin, win, cin = xin.shape
    ho, wo = hin - k + 1, win - k + 1
    tr = _choose_row_tile(ho, wo, target_tp)
    t_tiles = ho // tr
    tr_in = tr + k - 1

    if t_tiles == 1:
        xt = xin[:, None]
    else:
        # TODO(synk): replace this host-side halo stack (one extra HBM round
        # trip per layer) with in-kernel halo DMA (pl.ANY + make_async_copy).
        xt = jnp.stack(
            [jax.lax.slice_in_dim(xin, i * tr, i * tr + tr_in, axis=1)
             for i in range(t_tiles)], axis=1)

    y, mean, m2 = conv_stats_pallas(xt, layer["w"], k, wo, tr,
                                    vmem_limit=vmem_limit)
    res_flat = None
    if residual is not None:
        res_flat = residual.reshape(n, ho * wo, residual.shape[-1])
    out = norm_act_pallas(y, mean, m2, tr * wo, act=layer["act"],
                          residual=res_flat, vmem_limit=vmem_limit)
    return out.reshape(n, ho, wo, out.shape[-1])


# ---------------------------------------------------------------------------
# Deterministic parameter init + weight re-layout to the folded-tap format.
# ---------------------------------------------------------------------------
def _conv_params(key, k, cin, cout):
    """PyTorch-layout (cout, cin, kh, kw) weights; bias kept only for parity."""
    wkey, bkey = jax.random.split(key)
    fan_in = k * k * cin
    w = jax.random.normal(wkey, (cout, cin, k, k), jnp.float32) / np.sqrt(fan_in)
    b = jax.random.normal(bkey, (cout,), jnp.float32) * 0.01
    return w, b


def _pack_first7x7(w_t, cpad_out):
    cout, cin, kh, kw = w_t.shape
    w2 = jnp.transpose(w_t, (2, 3, 1, 0)).reshape(kh * kw * cin, cout)
    out = jnp.zeros((kh * kw * cin, cpad_out), jnp.float32).at[:, :cout].set(w2)
    return out.astype(jnp.bfloat16)


def _pack_res3x3(w_t, cin_store, cpad_out):
    cout, c_real, kh, kw = w_t.shape
    w2 = jnp.zeros((kh, kw, cin_store, cpad_out), jnp.float32)
    w2 = w2.at[:, :, :c_real, :cout].set(jnp.transpose(w_t, (2, 3, 1, 0)))
    return w2.reshape(kh * kw * cin_store, cpad_out).astype(jnp.bfloat16)


def _pack_down4x4(w_t, cpad_out):
    """4x4/s2 conv weight -> 2x2/s1 conv weight over space-to-depth channels."""
    w_np = np.asarray(w_t, np.float32)
    cout, c_real = w_np.shape[:2]
    w_eff = np.zeros((2, 2, 2, 2, c_real, cout), np.float32)
    for dh in range(2):
        for dw in range(2):
            for dr in range(2):
                for dc in range(2):
                    w_eff[dh, dw, dr, dc] = np.transpose(
                        w_np[:, :, 2 * dh + dr, 2 * dw + dc], (1, 0))
    w_eff = w_eff.reshape(16 * c_real, cout)
    out = np.zeros((16 * c_real, cpad_out), np.float32)
    out[:, :cout] = w_eff
    return jnp.asarray(out, jnp.bfloat16)


def build_content_encoder_funit(key, downs, n_res, input_dim, dim,
                                norm="in", activ="relu", pad_type="reflect"):
    # Guard: conv bias is dropped because InstanceNorm(affine=False) cancels it
    # exactly.  Any other norm would make that a silent mismatch.
    assert norm == "in" and activ == "relu" and pad_type == "reflect"
    keys = jax.random.split(key, 1 + downs + 2 * n_res)
    ki = 0
    layers = []

    # Conv2dBlock(input_dim, dim, 7, 1, 3, norm='in', relu, reflect)
    w, b = _conv_params(keys[ki], 7, input_dim, dim); ki += 1
    layers.append(dict(kind="first7x7", k_eff=1,
                       w=_pack_first7x7(w, _round_up(dim, LANES)),
                       b=b, cin_real=input_dim, cout_real=dim, act="relu"))
    cur = dim

    # downs x Conv2dBlock(dim, 2*dim, 4, 2, 1, norm='in', relu, reflect)
    for _ in range(downs):
        cout = 2 * cur
        w, b = _conv_params(keys[ki], 4, cur, cout); ki += 1
        layers.append(dict(kind="down4x4", k_eff=2,
                           w=_pack_down4x4(w, _round_up(cout, LANES)),
                           b=b, cin_real=cur, cout_real=cout, act="relu"))
        cur = cout

    # ResBlocks(n_res, dim): Conv3x3(IN, relu) -> Conv3x3(IN, none) + skip
    cin_store = _round_up(cur, LANES)
    res_blocks = []
    for _ in range(n_res):
        w1, b1 = _conv_params(keys[ki], 3, cur, cur); ki += 1
        w2, b2 = _conv_params(keys[ki], 3, cur, cur); ki += 1
        res_blocks.append((
            dict(kind="res3x3", k_eff=3, w=_pack_res3x3(w1, cin_store, cin_store),
                 b=b1, cin_real=cur, cout_real=cur, act="relu"),
            dict(kind="res3x3", k_eff=3, w=_pack_res3x3(w2, cin_store, cin_store),
                 b=b2, cin_real=cur, cout_real=cur, act="none"),
        ))
    return dict(layers=layers, res_blocks=res_blocks, output_dim=cur)


def content_encoder_funit_forward(params, x_nchw, *, target_tp=None):
    """x_nchw: (N, Cin, H, W) -> (N, Cout, H', W') (PyTorch NCHW convention)."""
    vmem_limit, default_tp = _tpu_defaults()
    if target_tp is None:
        target_tp = default_tp
    x = jnp.transpose(x_nchw, (0, 2, 3, 1)).astype(jnp.bfloat16)   # -> NHWC bf16
    for layer in params["layers"]:
        x = apply_conv_block(x, layer, target_tp=target_tp, vmem_limit=vmem_limit)
    for conv1, conv2 in params["res_blocks"]:
        h = apply_conv_block(x, conv1, target_tp=target_tp, vmem_limit=vmem_limit)
        x = apply_conv_block(h, conv2, residual=x,           # fused skip add
                             target_tp=target_tp, vmem_limit=vmem_limit)
    x = x[..., :params["output_dim"]].astype(jnp.float32)   # drop lane padding
    return jnp.transpose(x, (0, 3, 1, 2))                   # -> NCHW


if __name__ == "__main__":
    key = jax.random.PRNGKey(0)
    pkey, xkey = jax.random.split(key)

    # Small shapes: batch=2, input_dim=4, spatial=16; dim=8, downs=2, n_res=2.
    downs, n_res, input_dim, dim = 2, 2, 4, 8
    params = build_content_encoder_funit(pkey, downs, n_res, input_dim, dim)

    x = jax.random.normal(xkey, (2, input_dim, 16, 16), jnp.float32)
    # target_tp=128 forces the multi-row-tile path (halo tiles + Chan stats
    # combine) on the first layer even at these toy spatial sizes.
    out = content_encoder_funit_forward(params, x, target_tp=128)
    out = jax.block_until_ready(out)

    expected = (2, dim * (2 ** downs), 16 // (2 ** downs), 16 // (2 ** downs))
    assert out.shape == expected, (out.shape, expected)
    assert bool(jnp.all(jnp.isfinite(out)))
    print("KERNEL_OK")
</pallas_src>

<mosaic_0001>
module attributes {stable_mosaic.version = 11 : i64} {
  func.func @kernel(%arg0: i32, %arg1: i32, %arg2: memref<1x1x8x16x196xbf16, #tpu.memory_space<vmem>>, %arg3: memref<196x128xbf16, #tpu.memory_space<vmem>>, %arg4: memref<1x128x128xbf16, #tpu.memory_space<vmem>>, %arg5: memref<1x1x128xf32, #tpu.memory_space<vmem>>, %arg6: memref<1x1x128xf32, #tpu.memory_space<vmem>>) attributes {dimension_semantics = [#tpu.dimension_semantics<parallel>, #tpu.dimension_semantics<arbitrary>], iteration_bounds = array<i64: 2, 2>, scalar_prefetch = 0 : i64, scratch_operands = 0 : i64, tpu.core_type = #tpu.core_type<tc>, window_params = [{transform_indices = @transform_0, window_bounds = array<i64: 1, 1, 8, 16, 196>}, {pipeline_mode = #tpu.pipeline_mode<synchronous>, transform_indices = @transform_1, window_bounds = array<i64: 196, 128>}, {transform_indices = @transform_2, window_bounds = array<i64: 1, 128, 128>}, {transform_indices = @transform_3, window_bounds = array<i64: 1, 1, 128>}, {transform_indices = @transform_4, window_bounds = array<i64: 1, 1, 128>}]} {
    %c0 = arith.constant 0 : index
    %c0_0 = arith.constant 0 : index
    %c0_1 = arith.constant 0 : index
    %c0_2 = arith.constant 0 : index
    %c0_3 = arith.constant 0 : index
    %0 = vector.load %arg2[%c0, %c0_0, %c0_1, %c0_2, %c0_3] : memref<1x1x8x16x196xbf16, #tpu.memory_space<vmem>>, vector<1x1x8x16x196xbf16>
    %1 = vector.shape_cast %0 : vector<1x1x8x16x196xbf16> to vector<8x16x196xbf16>
    %2 = vector.shape_cast %1 : vector<8x16x196xbf16> to vector<128x196xbf16>
    %c0_4 = arith.constant 0 : index
    %c0_5 = arith.constant 0 : index
    %3 = vector.load %arg3[%c0_4, %c0_5] : memref<196x128xbf16, #tpu.memory_space<vmem>>, vector<196x128xbf16>
    %cst = arith.constant dense<0.000000e+00> : vector<128x128xf32>
    %4 = tpu.matmul %2, %3, %cst {dimension_numbers = #tpu.dot_dimension_numbers<[1], [0], [0], [1], [0, 0, 1, 1], [], []>} : vector<128x196xbf16>, vector<196x128xbf16>, vector<128x128xf32> -> vector<128x128xf32>
    %5 = arith.truncf %4 : vector<128x128xf32> to vector<128x128xbf16>
    %c0_6 = arith.constant 0 : index
    %c0_7 = arith.constant 0 : index
    %c0_8 = arith.constant 0 : index
    %6 = vector.load %arg4[%c0_6, %c0_7, %c0_8] : memref<1x128x128xbf16, #tpu.memory_space<vmem>>, vector<1x128x128xbf16>
    %7 = vector.shape_cast %6 : vector<1x128x128xbf16> to vector<128x128xbf16>
    %8 = vector.shape_cast %5 : vector<128x128xbf16> to vector<1x128x128xbf16>
    tpu.vector_store %arg4[%c0_6, %c0_7, %c0_8], %8 {strides = array<i32>} : memref<1x128x128xbf16, #tpu.memory_space<vmem>>, vector<1x128x128xbf16>,
    %cst_9 = arith.constant dense<0.000000e+00> : vector<128xf32>
    %9 = vector.multi_reduction <add>, %4, %cst_9 [0] : vector<128x128xf32> to vector<128xf32>
    %10 = vector.shape_cast %9 : vector<128xf32> to vector<1x128xf32>
    %cst_10 = arith.constant 7.812500e-03 : f32
    %11 = vector.broadcast %cst_10 : f32 to vector<1x128xf32>
    %12 = arith.mulf %10, %11 : vector<1x128xf32>
    %13 = vector.broadcast %12 : vector<1x128xf32> to vector<128x128xf32>
    %14 = arith.subf %4, %13 : vector<128x128xf32>
    %15 = arith.mulf %14, %14 : vector<128x128xf32>
    %cst_11 = arith.constant dense<0.000000e+00> : vector<128xf32>
    %16 = vector.multi_reduction <add>, %15, %cst_11 [0] : vector<128x128xf32> to vector<128xf32>
    %17 = vector.shape_cast %16 : vector<128xf32> to vector<1x128xf32>
    %c0_i32 = arith.constant 0 : i32
    %18 = arith.cmpi eq, %arg1, %c0_i32 : i32
    %19 = arith.extui %18 : i1 to i32
    %c0_i32_12 = arith.constant 0 : i32
    %20 = arith.cmpi ne, %19, %c0_i32_12 : i32
    scf.if %20 {
      %cst_28 = arith.constant 0.000000e+00 : f32
      %45 = vector.broadcast %cst_28 : f32 to vector<1x128xf32>
      %c0_29 = arith.constant 0 : index
      %c0_30 = arith.constant 0 : index
      %c0_31 = arith.constant 0 : index
      %46 = vector.load %arg5[%c0_29, %c0_30, %c0_31] : memref<1x1x128xf32, #tpu.memory_space<vmem>>, vector<1x1x128xf32>
      %47 = vector.shape_cast %46 : vector<1x1x128xf32> to vector<1x128xf32>
      %48 = vector.shape_cast %45 : vector<1x128xf32> to vector<1x1x128xf32>
      tpu.vector_store %arg5[%c0_29, %c0_30, %c0_31], %48 {strides = array<i32>} : memref<1x1x128xf32, #tpu.memory_space<vmem>>, vector<1x1x128xf32>,
      %cst_32 = arith.constant 0.000000e+00 : f32
      %49 = vector.broadcast %cst_32 : f32 to vector<1x128xf32>
      %c0_33 = arith.constant 0 : index
      %c0_34 = arith.constant 0 : index
      %c0_35 = arith.constant 0 : index
      %50 = vector.load %arg6[%c0_33, %c0_34, %c0_35] : memref<1x1x128xf32, #tpu.memory_space<vmem>>, vector<1x1x128xf32>
      %51 = vector.shape_cast %50 : vector<1x1x128xf32> to vector<1x128xf32>
      %52 = vector.shape_cast %49 : vector<1x128xf32> to vector<1x1x128xf32>
      tpu.vector_store %arg6[%c0_33, %c0_34, %c0_35], %52 {strides = array<i32>} : memref<1x1x128xf32, #tpu.memory_space<vmem>>, vector<1x1x128xf32>,
    } else {
    }
    %21 = arith.sitofp %arg1 : i32 to f32
    %cst_13 = arith.constant 1.000000e+00 : f32
    %22 = arith.addf %21, %cst_13 : f32
    %cst_14 = arith.constant 1.000000e+00 : f32
    %23 = arith.divf %cst_14, %22 : f32
    %c0_15 = arith.constant 0 : index
    %c0_16 = arith.constant 0 : index
    %c0_17 = arith.constant 0 : index
    %24 = vector.load %arg5[%c0_15, %c0_16, %c0_17] : memref<1x1x128xf32, #tpu.memory_space<vmem>>, vector<1x1x128xf32>
    %25 = vector.shape_cast %24 : vector<1x1x128xf32> to vector<1x128xf32>
    %26 = arith.subf %12, %25 : vector<1x128xf32>
    %27 = vector.broadcast %23 : f32 to vector<1x128xf32>
    %28 = arith.mulf %26, %27 : vector<1x128xf32>
    %29 = arith.addf %25, %28 : vector<1x128xf32>
    %c0_18 = arith.constant 0 : index
    %c0_19 = arith.constant 0 : index
    %c0_20 = arith.constant 0 : index
    %30 = vector.load %arg5[%c0_18, %c0_19, %c0_20] : memref<1x1x128xf32, #tpu.memory_space<vmem>>, vector<1x1x128xf32>
    %31 = vector.shape_cast %30 : vector<1x1x128xf32> to vector<1x128xf32>
    %32 = vector.shape_cast %29 : vector<1x128xf32> to vector<1x1x128xf32>
    tpu.vector_store %arg5[%c0_18, %c0_19, %c0_20], %32 {strides = array<i32>} : memref<1x1x128xf32, #tpu.memory_space<vmem>>, vector<1x1x128xf32>,
    %c0_21 = arith.constant 0 : index
    %c0_22 = arith.constant 0 : index
    %c0_23 = arith.constant 0 : index
    %33 = vector.load %arg6[%c0_21, %c0_22, %c0_23] : memref<1x1x128xf32, #tpu.memory_space<vmem>>, vector<1x1x128xf32>
    %34 = vector.shape_cast %33 : vector<1x1x128xf32> to vector<1x128xf32>
    %35 = arith.addf %34, %17 : vector<1x128xf32>
    %36 = arith.mulf %26, %26 : vector<1x128xf32>
    %cst_24 = arith.constant 1.280000e+02 : f32
    %37 = arith.mulf %21, %cst_24 : f32
    %38 = arith.mulf %37, %23 : f32
    %39 = vector.broadcast %38 : f32 to vector<1x128xf32>
    %40 = arith.mulf %36, %39 : vector<1x128xf32>
    %41 = arith.addf %35, %40 : vector<1x128xf32>
    %c0_25 = arith.constant 0 : index
    %c0_26 = arith.constant 0 : index
    %c0_27 = arith.constant 0 : index
    %42 = vector.load %arg6[%c0_25, %c0_26, %c0_27] : memref<1x1x128xf32, #tpu.memory_space<vmem>>, vector<1x1x128xf32>
    %43 = vector.shape_cast %42 : vector<1x1x128xf32> to vector<1x128xf32>
    %44 = vector.shape_cast %41 : vector<1x128xf32> to vector<1x1x128xf32>
    tpu.vector_store %arg6[%c0_25, %c0_26, %c0_27], %44 {strides = array<i32>} : memref<1x1x128xf32, #tpu.memory_space<vmem>>, vector<1x1x128xf32>,
    return
  }
  func.func @transform_0(%arg0: i32, %arg1: i32) -> (i32, i32, i32, i32, i32) {
    %c0_i32 = arith.constant 0 : i32
    %c0_i32_0 = arith.constant 0 : i32
    %c0_i32_1 = arith.constant 0 : i32
    %c0_i32_2 = arith.constant 0 : i32
    return %arg0, %arg1, %c0_i32, %c0_i32_0, %c0_i32_1 : i32, i32, i32, i32, i32
  }
  func.func @transform_1(%arg0: i32, %arg1: i32) -> (i32, i32) {
    %c0_i32 = arith.constant 0 : i32
    %c0_i32_0 = arith.constant 0 : i32
    %c0_i32_1 = arith.constant 0 : i32
    return %c0_i32, %c0_i32_0 : i32, i32
  }
  func.func @transform_2(%arg0: i32, %arg1: i32) -> (i32, i32, i32) {
    %c0_i32 = arith.constant 0 : i32
    %c0_i32_0 = arith.constant 0 : i32
    return %arg0, %arg1, %c0_i32 : i32, i32, i32
  }
  func.func @transform_3(%arg0: i32, %arg1: i32) -> (i32, i32, i32) {
    %c0_i32 = arith.constant 0 : i32
    %c0_i32_0 = arith.constant 0 : i32
    %c0_i32_1 = arith.constant 0 : i32
    return %arg0, %c0_i32, %c0_i32_0 : i32, i32, i32
  }
  func.func @transform_4(%arg0: i32, %arg1: i32) -> (i32, i32, i32) {
    %c0_i32 = arith.constant 0 : i32
    %c0_i32_0 = arith.constant 0 : i32
    %c0_i32_1 = arith.constant 0 : i32
    return %arg0, %c0_i32, %c0_i32_0 : i32, i32, i32
  }
}

</mosaic_0001>

<llo_original>
// kernel: tpu_custom_call.1
$region0: #{tpu_custom_call.1}
  #allocation0 [shape = 'u32[]', space=smem, size = 0x4, offset = 0x4, fixed_abs, tag = 'smem constant byte address 0x4 - core index']
  #allocation1 [shape = 'u32[144,128]{1,0:T(1,128)}', space=vmem, size = 0x12000, scoped, tag = 'internal scratch']
  %s0 = inlined_call_operand.hbm [shape: bf16[2,2,8,16,196], index: 0, kind: input, shape index: {}]
  %s1 = inlined_call_operand.hbm [shape: bf16[196,128], index: 1, kind: input, shape index: {}]
  %s2 = inlined_call_operand.hbm [shape: bf16[2,256,128], index: 2, kind: output, shape index: {0}]
  %s3 = inlined_call_operand.hbm [shape: f32[2,1,128], index: 3, kind: output, shape index: {1}]
  %s4 = inlined_call_operand.hbm [shape: f32[2,1,128], index: 4, kind: output, shape index: {2}]
  %5 = xla_tuple %s2, %s3, %s4
  %s6 = sld [smem:[#allocation0]]
  $region69: #{tpu_custom_call.1} parent=0
    _
  %s8 = ssub.s32 1, %s6
  %s9 = scalar_select 0, %s8, %s6
  $region1: #{tpu_custom_call.1} parent=0
    #allocation2 [shape = 'u8[131072]{0}', space=vmem, size = 0x20000, scoped, tag = 'input window, operand 0']
    #allocation3 [shape = 's32[2]{0}', space=sflag, size = 0x8, scoped, tag = 'scoped memory for tpu_custom_call.1']
    #allocation4 [shape = 's32[2]{0}', space=sflag, size = 0x8, scoped, tag = 'scoped memory for tpu_custom_call.1']
    #allocation5 [shape = 'u8[51200]{0}', space=vmem, size = 0xc800, scoped, tag = 'input window, operand 1, single buffered']
    #allocation6 [shape = 's32[1]{0}', space=sflag, size = 0x4, scoped, tag = 'scoped memory for tpu_custom_call.1']
    #allocation7 [shape = 'u8[65536]{0}', space=vmem, size = 0x10000, scoped, tag = 'output window, operand 0']
    #allocation8 [shape = 'u8[1024]{0}', space=vmem, size = 0x400, scoped, tag = 'output window, operand 1']
    #allocation9 [shape = 's32[2]{0}', space=sflag, size = 0x8, scoped, tag = 'scoped memory for tpu_custom_call.1']
    #allocation10 [shape = 'u8[1024]{0}', space=vmem, size = 0x400, scoped, tag = 'output window, operand 2']
    %10 = vsyncpa [#allocation3], 0
    %s11 = scalar_lea.sflag [#allocation3], 1
    %12 = vsyncpa %s11, 0
    %13 = vsyncpa [#allocation6], 0
    %14 = vsyncpa [#allocation4], 0
    %s15 = scalar_lea.sflag [#allocation4], 1
    %16 = vsyncpa %s15, 0
    %17 = vsyncpa [#allocation9], 0
    %s18 = scalar_lea.sflag [#allocation9], 1
    %19 = vsyncpa %s18, 0
    loop: start=0, step=1, limit=6
    $region2: #{tpu_custom_call.1} parent=1 // loop_pre_header
      _
    $region3: #{tpu_custom_call.1} parent=1 // loop_header
      %s21 = sphi 0, %s25
      %p22 = scmp.ge.s32.totalorder %s21, 6
      %s28 = sphi 0, %s40
      %s29 = sphi 0, %s36
      %s30 = sphi 0, %s28
      %s31 = sphi 0, %s29
      %s32 = sphi 0, %s30
      %s33 = sphi 0, %s31
      %s45 = sphi 0, %s47
      %s48 = sphi 0, %s45
      %s49 = sphi 0, %s48
      %s65 = sphi 0, %s49
      %s69 = sphi 0, %s69
      %s71 = sphi 0, %s69
      %s72 = sphi 0, %s71
      %s86 = sphi 0, %s72
      %s94 = sphi 0, %s96
      %s97 = sphi 0, %s94
      %s98 = sphi 0, %s97
      %s114 = sphi 0, %s98
      %s120 = sphi 0, %s122
      %s123 = sphi 0, %s120
      %s124 = sphi 0, %s123
      %s140 = sphi 0, %s124
      %s146 = sphi 0, %s148
      %s149 = sphi 0, %s146
      %s150 = sphi 0, %s149
      %s166 = sphi 0, %s150
    $region4: #{tpu_custom_call.1} parent=1 // loop_header_branch
      %24 = sbr.rel (%p22) target = $region8
    $region5: #{tpu_custom_call.1} parent=1 // loop_body
      %s26 = ssub.s32 %s21, 1
      %s27 = ssub.s32 %s21, 2
      %s34 = sadd.s32 1, %s29
      %p35 = scmp.ge.s32.totalorder %s34, 2
      %s36 = scalar_select %p35, 0, %s34
      %s37 = sadd.s32 1, %s28
      %s38 = scalar_select %p35, %s37, %s28
      %p39 = scmp.ge.s32.totalorder %s38, 2
      %s40 = scalar_select %p39, 0, %s38
      %s41 = ssub.s32 %s28, %s40
      %s42 = ssub.s32 %s29, %s36
      %s43 = sor.u32 %s41, %s42
      %p44 = scmp.eq.s32.totalorder %s43, 0
      %s46 = sadd.s32 %s45, 1
      %s47 = scalar_select %p44, %s45, %s46
      %p50 = pneg %p44
      %p51 = scmp.eq.s32.totalorder %s21, 3
      %p52 = por %p50, %p51
      %p53 = scmp.ne.s32.totalorder %s45, %s48
      %p54 = scmp.eq.s32.totalorder %s21, 0
      %p55 = por %p53, %p54
      %p56 = scmp.ne.s32.totalorder %s45, %s48
      %p57 = scmp.eq.s32.totalorder %s26, 3
      %p58 = por %p56, %p57
      %p59 = scmp.ne.s32.totalorder %s48, %s49
      %p60 = scmp.eq.s32.totalorder %s26, 0
      %p61 = por %p59, %p60
      %p62 = scmp.ne.s32.totalorder %s48, %s49
      %p63 = scmp.eq.s32.totalorder %s27, 3
      %p64 = por %p62, %p63
      %p66 = scmp.ne.s32.totalorder %s49, %s65
      %p67 = scmp.eq.s32.totalorder %s27, 0
      %p68 = por %p66, %p67
      %s70 = sadd.s32 %s69, 1
      %p73 = scmp.eq.s32.totalorder %s21, 3
      %p74 = scmp.ne.s32.totalorder %s69, %s71
      %p75 = scmp.eq.s32.totalorder %s21, 0
      %p76 = por %p74, %p75
      %p77 = scmp.ne.s32.totalorder %s69, %s71
      %p78 = scmp.eq.s32.totalorder %s26, 3
      %p79 = por %p77, %p78
      %p80 = scmp.ne.s32.totalorder %s71, %s72
      %p81 = scmp.eq.s32.totalorder %s26, 0
      %p82 = por %p80, %p81
      %p83 = scmp.ne.s32.totalorder %s71, %s72
      %p84 = scmp.eq.s32.totalorder %s27, 3
      %p85 = por %p83, %p84
      %p87 = scmp.ne.s32.totalorder %s72, %s86
      %p88 = scmp.eq.s32.totalorder %s27, 0
      %p89 = por %p87, %p88
      %s90 = ssub.s32 %s28, %s40
      %s91 = ssub.s32 %s29, %s36
      %s92 = sor.u32 %s90, %s91
      %p93 = scmp.eq.s32.totalorder %s92, 0
      %s95 = sadd.s32 %s94, 1
      %s96 = scalar_select %p93, %s94, %s95
      %p99 = pneg %p93
      %p100 = scmp.eq.s32.totalorder %s21, 3
      %p101 = por %p99, %p100
      %p102 = scmp.ne.s32.totalorder %s94, %s97
      %p103 = scmp.eq.s32.totalorder %s21, 0
      %p104 = por %p102, %p103
      %p105 = scmp.ne.s32.totalorder %s94, %s97
      %p106 = scmp.eq.s32.totalorder %s26, 3
      %p107 = por %p105, %p106
      %p108 = scmp.ne.s32.totalorder %s97, %s98
      %p109 = scmp.eq.s32.totalorder %s26, 0
      %p110 = por %p108, %p109
      %p111 = scmp.ne.s32.totalorder %s97, %s98
      %p112 = scmp.eq.s32.totalorder %s27, 3
      %p113 = por %p111, %p112
      %p115 = scmp.ne.s32.totalorder %s98, %s114
      %p116 = scmp.eq.s32.totalorder %s27, 0
      %p117 = por %p115, %p116
      %s118 = ssub.s32 %s28, %s40
      %p119 = scmp.eq.s32.totalorder %s118, 0
      %s121 = sadd.s32 %s120, 1
      %s122 = scalar_select %p119, %s120, %s121
      %p125 = pneg %p119
      %p126 = scmp.eq.s32.totalorder %s21, 3
      %p127 = por %p125, %p126
      %p128 = scmp.ne.s32.totalorder %s120, %s123
      %p129 = scmp.eq.s32.totalorder %s21, 0
      %p130 = por %p128, %p129
      %p131 = scmp.ne.s32.totalorder %s120, %s123
      %p132 = scmp.eq.s32.totalorder %s26, 3
      %p133 = por %p131, %p132
      %p134 = scmp.ne.s32.totalorder %s123, %s124
      %p135 = scmp.eq.s32.totalorder %s26, 0
      %p136 = por %p134, %p135
      %p137 = scmp.ne.s32.totalorder %s123, %s124
      %p138 = scmp.eq.s32.totalorder %s27, 3
      %p139 = por %p137, %p138
      %p141 = scmp.ne.s32.totalorder %s124, %s140
      %p142 = scmp.eq.s32.totalorder %s27, 0
      %p143 = por %p141, %p142
      %s144 = ssub.s32 %s28, %s40
      %p145 = scmp.eq.s32.totalorder %s144, 0
      %s147 = sadd.s32 %s146, 1
      %s148 = scalar_select %p145, %s146, %s147
      %p151 = pneg %p145
      %p152 = scmp.eq.s32.totalorder %s21, 3
      %p153 = por %p151, %p152
      %p154 = scmp.ne.s32.totalorder %s146, %s149
      %p155 = scmp.eq.s32.totalorder %s21, 0
      %p156 = por %p154, %p155
      %p157 = scmp.ne.s32.totalorder %s146, %s149
      %p158 = scmp.eq.s32.totalorder %s26, 3
      %p159 = por %p157, %p158
      %p160 = scmp.ne.s32.totalorder %s149, %s150
      %p161 = scmp.eq.s32.totalorder %s26, 0
      %p162 = por %p160, %p161
      %p163 = scmp.ne.s32.totalorder %s149, %s150
      %p164 = scmp.eq.s32.totalorder %s27, 3
      %p165 = por %p163, %p164
      %p167 = scmp.ne.s32.totalorder %s150, %s166
      %p168 = scmp.eq.s32.totalorder %s27, 0
      %p169 = por %p167, %p168
      %p170 = scmp.le.s32.totalorder 1, %s21
      %p171 = scmp.lt.s32.totalorder %s21, 5
      %p172 = pnand %p170, %p171
      %p173 = pneg %p172
      // Predicated region
      $region9: #{tpu_custom_call.1} parent=5 // pred_check
        _
      $region10: #{tpu_custom_call.1} parent=5 // pred_check_branch
        %175 = sbr.rel (%p172) target = $region12
      $region11: #{tpu_custom_call.1} parent=5 // pred_region
        %s176 = ssub.s32 %s21, 1
        // Predicated region
        $region13: #{tpu_custom_call.1} parent=11 // pred_check
          %p177 = pneg %p82
        $region14: #{tpu_custom_call.1} parent=11 // pred_check_branch
          %179 = sbr.rel (%p177) target = $region16
        $region15: #{tpu_custom_call.1} parent=11 // pred_region
          %s181 = ssub.s32 1600, 1600
          %182 = vsyncadd [#allocation6], %s181
          %s183 = sshll.u32 [#allocation5], 4
          %s184 = int_to_ptr.vmem [resolvable:$true] %s183
          %189 = dma.hbm_to_vmem [thread:$0]  %s1, 1600, %s184, [#allocation6], 64, 64, 4
        $region16: #{tpu_custom_call.1} parent=11 // pred_fallthru
          _
      $region12: #{tpu_custom_call.1} parent=5 // pred_fallthru
        _
      %p190 = scmp.lt.s32.totalorder %s21, 4
      // Predicated region
      $region17: #{tpu_custom_call.1} parent=5 // pred_check
        %p191 = pneg %p190
      $region18: #{tpu_custom_call.1} parent=5 // pred_check_branch
        %193 = sbr.rel (%p191) target = $region20
      $region19: #{tpu_custom_call.1} parent=5 // pred_region
        // Predicated region
        $region21: #{tpu_custom_call.1} parent=19 // pred_check
          %p194 = pneg %p55
        $region22: #{tpu_custom_call.1} parent=19 // pred_check_branch
          %196 = sbr.rel (%p194) target = $region24
        $region23: #{tpu_custom_call.1} parent=19 // pred_region
          %s197 = sand.u32 %s45, 1
          %s198 = scalar_lea.sflag [#allocation3], %s197
          %s199 = sand.u32 %s45, 1
          %s200 = smul.addr %s199, 128
          %s201 = scalar_lea.vmem [#allocation2], %s200
          %s203 = ssub.s32 2048, 2048
          %204 = vsyncadd %s198, %s203
          %s205 = smul.addr %s29, 32
          %s206 = smul.addr %s28, 64
          %s207 = sadd.s32 %s205, %s206
          %s208 = smul.addr %s207, 64
          %s209 = scalar_lea.hbm %s0, %s208
          %s210 = sshll.u32 %s201, 4
          %s211 = int_to_ptr.vmem [resolvable:$true] %s210
          %216 = dma.hbm_to_vmem [thread:$0]  %s209, 2048, %s211, %s198, 128, 128, 8
        $region24: #{tpu_custom_call.1} parent=19 // pred_fallthru
          _
      $region20: #{tpu_custom_call.1} parent=5 // pred_fallthru
        _
      %p217 = scmp.le.s32.totalorder 1, %s21
      %p218 = scmp.lt.s32.totalorder %s21, 5
      %p219 = pnand %p217, %p218
      %p220 = pneg %p219
      // Predicated region
      $region25: #{tpu_custom_call.1} parent=5 // pred_check
        _
      $region26: #{tpu_custom_call.1} parent=5 // pred_check_branch
        %222 = sbr.rel (%p219) target = $region28
      $region27: #{tpu_custom_call.1} parent=5 // pred_region
        %s223 = ssub.s32 %s21, 1
        %s224 = sand.u32 %s48, 1
        %s225 = scalar_lea.sflag [#allocation3], %s224
        %s226 = sand.u32 %s48, 1
        %s227 = smul.addr %s226, 128
        %s228 = scalar_lea.vmem [#allocation2], %s227
        // Predicated region
        $region29: #{tpu_custom_call.1} parent=27 // pred_check
          %p229 = pneg %p61
        $region30: #{tpu_custom_call.1} parent=27 // pred_check_branch
          %231 = sbr.rel (%p229) target = $region32
        $region31: #{tpu_custom_call.1} parent=27 // pred_region
          %232 = dma.done %s225, 2048
        $region32: #{tpu_custom_call.1} parent=27 // pred_fallthru
          _
        // Predicated region
        $region33: #{tpu_custom_call.1} parent=27 // pred_check
          %p233 = pneg %p82
        $region34: #{tpu_custom_call.1} parent=27 // pred_check_branch
          %235 = sbr.rel (%p233) target = $region36
        $region35: #{tpu_custom_call.1} parent=27 // pred_region
          %236 = dma.done [#allocation6], 1600
        $region36: #{tpu_custom_call.1} parent=27 // pred_fallthru
          _
        %s237 = sand.u32 %s48, 1
        %s238 = scalar_lea.sflag [#allocation3], %s237
        %s239 = sand.u32 %s48, 1
        %s240 = smul.addr %s239, 128
        %s241 = scalar_lea.vmem [#allocation2], %s240
        %p242 = pneg %p61
        %p243 = pneg %p58
        %p244 = pneg %p82
        %p245 = pneg %p79
        %p246 = pneg %p110
        %p247 = pneg %p107
        %s248 = sand.u32 %s97, 1
        %s249 = scalar_lea.sflag [#allocation4], %s248
        %s250 = sand.u32 %s97, 1
        %s251 = smul.addr %s250, 64
        %s252 = scalar_lea.vmem [#allocation7], %s251
        %p253 = pneg %p136
        %p254 = pneg %p133
        %s255 = sand.u32 %s26, 1
        %s256 = scalar_lea.sflag [#allocation9], %s255
        %s257 = sand.u32 %s123, 1
        %s258 = scalar_lea.vmem [#allocation8], %s257
        %p259 = pneg %p162
        %p260 = pneg %p159
        %s261 = sand.u32 %s26, 1
        %s262 = scalar_lea.sflag [#allocation9], %s261
        %s263 = sand.u32 %s149, 1
        %s264 = scalar_lea.vmem [#allocation10], %s263
        %s265 = smul.u32 16, %s31
        %v267 = vld [vmem:[%s228] sm:$0xff]
        %v268 = vld [vmem:[%s228 + $0x8] sm:$0xff]
        %v269 = vld [vmem:[%s228 + $0x10] sm:$0xff]
        %v270 = vld [vmem:[%s228 + $0x18] sm:$0xff]
        %v271 = vld [vmem:[%s228 + $0x20] sm:$0xff]
        %v272 = vld [vmem:[%s228 + $0x28] sm:$0xff]
        %v273 = vld [vmem:[%s228 + $0x30] sm:$0xff]
        %v274 = vld [vmem:[%s228 + $0x38] sm:$0xff]
        %v275 = vld [vmem:[%s228 + $0x40] sm:$0xff]
        %v276 = vld [vmem:[%s228 + $0x48] sm:$0xff]
        %v277 = vld [vmem:[%s228 + $0x50] sm:$0xff]
        %v278 = vld [vmem:[%s228 + $0x58] sm:$0xff]
        %v279 = vld [vmem:[%s228 + $0x60] sm:$0xff]
        %v280 = vld [vmem:[%s228 + $0x68] sm:$0xff]
        %v281 = vld [vmem:[%s228 + $0x70] sm:$0xff]
        %v282 = vld [vmem:[%s228 + $0x78] sm:$0xff]
        %v283 = vld [vmem:[#allocation5] sm:$0xf]
        %v284 = vld [vmem:[#allocation5 + $0x4] sm:$0xf]
        %v285 = vld [vmem:[#allocation5 + $0x8] sm:$0xf]
        %v286 = vld [vmem:[#allocation5 + $0xc] sm:$0xf]
        %v287 = vld [vmem:[#allocation5 + $0x10] sm:$0xf]
        %v288 = vld [vmem:[#allocation5 + $0x14] sm:$0xf]
        %v289 = vld [vmem:[#allocation5 + $0x18] sm:$0xf]
        %v290 = vld [vmem:[#allocation5 + $0x1c] sm:$0xf]
        %v291 = vld [vmem:[#allocation5 + $0x20] sm:$0xf]
        %v292 = vld [vmem:[#allocation5 + $0x24] sm:$0xf]
        %v293 = vld [vmem:[#allocation5 + $0x28] sm:$0xf]
        %v294 = vld [vmem:[#allocation5 + $0x2c] sm:$0xf]
        %v295 = vld [vmem:[#allocation5 + $0x30] sm:$0xf]
        %v296 = vld [vmem:[#allocation5 + $0x34] sm:$0xf]
        %v297 = vld [vmem:[#allocation5 + $0x38] sm:$0xf]
        %v298 = vld [vmem:[#allocation5 + $0x3c] sm:$0xf]
        %v299 = vld [vmem:[#allocation5 + $0x40] sm:$0xf]
        %v300 = vld [vmem:[#allocation5 + $0x44] sm:$0xf]
        %v301 = vld [vmem:[#allocation5 + $0x48] sm:$0xf]
        %v302 = vld [vmem:[#allocation5 + $0x4c] sm:$0xf]
        %v303 = vld [vmem:[#allocation5 + $0x50] sm:$0xf]
        %v304 = vld [vmem:[#allocation5 + $0x54] sm:$0xf]
        %v305 = vld [vmem:[#allocation5 + $0x58] sm:$0xf]
        %v306 = vld [vmem:[#allocation5 + $0x5c] sm:$0xf]
        %v307 = vld [vmem:[#allocation5 + $0x60] sm:$0x3]
        %v324 = vunpack.c.l.b16 %v267
        %v325 = vunpack.c.h.b16 %v267
        %v326 = vunpack.c.l.b16 %v268
        %v327 = vunpack.c.h.b16 %v268
        %v328 = vunpack.c.l.b16 %v269
        %v329 = vunpack.c.h.b16 %v269
        %v330 = vunpack.c.l.b16 %v270
        %v331 = vunpack.c.h.b16 %v270
        %v332 = vunpack.c.l.b16 %v271
        %v333 = vunpack.c.h.b16 %v271
        %v334 = vunpack.c.l.b16 %v272
        %v335 = vunpack.c.h.b16 %v272
        %v336 = vunpack.c.l.b16 %v273
        %v337 = vunpack.c.h.b16 %v273
        %v338 = vunpack.c.l.b16 %v274
        %v339 = vunpack.c.h.b16 %v274
        %v340 = vunpack.c.l.b16 %v275
        %v341 = vunpack.c.h.b16 %v275
        %v342 = vunpack.c.l.b16 %v276
        %v343 = vunpack.c.h.b16 %v276
        %v344 = vunpack.c.l.b16 %v277
        %v345 = vunpack.c.h.b16 %v277
        %v346 = vunpack.c.l.b16 %v278
        %v347 = vunpack.c.h.b16 %v278
        %v348 = vunpack.c.l.b16 %v279
        %v349 = vunpack.c.h.b16 %v279
        %v350 = vunpack.c.l.b16 %v280
        %v351 = vunpack.c.h.b16 %v280
        %v352 = vunpack.c.l.b16 %v281
        %v353 = vunpack.c.h.b16 %v281
        %v354 = vunpack.c.l.b16 %v282
        %v355 = vunpack.c.h.b16 %v282
        %v356 = vpack.c.b16 %v326, %v324
        %v357 = vpack.c.b16 %v327, %v325
        %v358 = vpack.c.b16 %v330, %v328
        %v359 = vpack.c.b16 %v331, %v329
        %v360 = vpack.c.b16 %v334, %v332
        %v361 = vpack.c.b16 %v335, %v333
        %v362 = vpack.c.b16 %v338, %v336
        %v363 = vpack.c.b16 %v339, %v337
        %v364 = vpack.c.b16 %v342, %v340
        %v365 = vpack.c.b16 %v343, %v341
        %v366 = vpack.c.b16 %v346, %v344
        %v367 = vpack.c.b16 %v347, %v345
        %v368 = vpack.c.b16 %v350, %v348
        %v369 = vpack.c.b16 %v351, %v349
        %v370 = vpack.c.b16 %v354, %v352
        %v371 = vpack.c.b16 %v355, %v353
        %v405 = vunpack.c.l.b16 %v283
        %v406 = vunpack.c.l.b16 %v284
        %v407 = vunpack.c.l.b16 %v285
        %v408 = vunpack.c.l.b16 %v286
        %v409 = vunpack.c.l.b16 %v287
        %v410 = vunpack.c.l.b16 %v288
        %v411 = vunpack.c.l.b16 %v289
        %v412 = vunpack.c.l.b16 %v290
        %v413 = vunpack.c.l.b16 %v291
        %v414 = vunpack.c.l.b16 %v292
        %v415 = vunpack.c.l.b16 %v293
        %v416 = vunpack.c.l.b16 %v294
        %v417 = vunpack.c.l.b16 %v295
        %v418 = vunpack.c.l.b16 %v296
        %v419 = vunpack.c.l.b16 %v297
        %v420 = vunpack.c.l.b16 %v298
        %v421 = vunpack.c.l.b16 %v299
        %v422 = vunpack.c.l.b16 %v300
        %v423 = vunpack.c.l.b16 %v301
        %v424 = vunpack.c.l.b16 %v302
        %v425 = vunpack.c.l.b16 %v303
        %v426 = vunpack.c.l.b16 %v304
        %v427 = vunpack.c.l.b16 %v305
        %v428 = vunpack.c.l.b16 %v306
        %v429 = vunpack.c.l.b16 %v307
        %v430 = vpack.c.b16 %v406, %v405
        %v431 = vpack.c.b16 %v408, %v407
        %v432 = vpack.c.b16 %v410, %v409
        %v433 = vpack.c.b16 %v412, %v411
        %v434 = vpack.c.b16 %v414, %v413
        %v435 = vpack.c.b16 %v416, %v415
        %v436 = vpack.c.b16 %v418, %v417
        %v437 = vpack.c.b16 %v420, %v419
        %v438 = vpack.c.b16 %v422, %v421
        %v439 = vpack.c.b16 %v424, %v423
        %v440 = vpack.c.b16 %v426, %v425
        %v441 = vpack.c.b16 %v428, %v427
        %v442 = vpack.c.b16 %v429, %v429
        %vm455 = vcmask 556032
        %v457 = vsel %vm455, %v357, 0
        %v460 = vsel %vm455, %v359, 0
        %v463 = vsel %vm455, %v361, 0
        %v466 = vsel %vm455, %v363, 0
        %v469 = vsel %vm455, %v365, 0
        %v472 = vsel %vm455, %v367, 0
        %v475 = vsel %vm455, %v369, 0
        %v478 = vsel %vm455, %v371, 0
        %vm480 = vcmask 1041408
        %v482 = vsel %vm480, %v442, 0
        %484 = vmatprep.subr.bf16.mxu0 0
        %485 = vmatpush1.bf16.msra.mxu0 %v430
        %486 = vmatprep.subr.bf16.mxu0 0
        %487 = vmatpush1.bf16.msra.mxu0 %v431
        %488 = vmatprep.subr.bf16.mxu0 0
        %489 = vmatpush1.bf16.msra.mxu0 %v432
        %490 = vmatprep.subr.bf16.mxu0 0
        %491 = vmatpush1.bf16.msra.mxu0 %v433
        %492 = vmatprep.subr.bf16.mxu0 0
        %493 = vmatpush1.bf16.msra.mxu0 %v434
        %494 = vmatprep.subr.bf16.mxu0 0
        %495 = vmatpush1.bf16.msra.mxu0 %v435
        %496 = vmatprep.subr.bf16.mxu0 0
        %497 = vmatpush1.bf16.msra.mxu0 %v436
        %498 = vmatprep.subr.bf16.mxu0 0
        %499 = vmatpush1.bf16.msra.mxu0 %v437
        %500 = vmatprep.subr.bf16.mxu0 0
        %501 = vmatpush1.bf16.msra.mxu0 %v438
        %502 = vmatprep.subr.bf16.mxu0 0
        %503 = vmatpush1.bf16.msra.mxu0 %v439
        %504 = vmatprep.subr.bf16.mxu0 0
        %505 = vmatpush1.bf16.msra.mxu0 %v440
        %506 = vmatprep.subr.bf16.mxu0 0
        %507 = vmatpush1.bf16.msra.mxu0 %v441
        %508 = vmatprep.subr.bf16.mxu0 0
        %509 = vmatpush1.bf16.msra.mxu0 %v482
        %510 = vmatprep.subr.bf16.mxu0 0
        %511 = vmatpush1.bf16.msra.mxu0 0
        %512 = vmatprep.subr.bf16.mxu0 0
        %513 = vmatpush1.bf16.msra.mxu0 0
        %514 = vmatprep.subr.bf16.mxu0 0
        %515 = vmatpush1.bf16.msra.mxu0 0
        %516 = vmatprep.mubr.bf16.mxu0 %v457
        %517 = vmatmul.mubr.bf16.gmra.mrb[0].mxu0 %v356
        %v518 = vpop.f32.mrb[0].mxu0
        %v519 = vadd.f32 0.0, %v518
        %v520 = vpop.f32.mrb[0].mxu0
        %v521 = vpop.f32.mrb[0].mxu0
        %v522 = vadd.f32 0.0, %v521
        %v523 = vpop.f32.mrb[0].mxu0
        %524 = vmatprep.mubr.bf16.mxu0 %v460
        %525 = vmatmul.mubr.bf16.gmra.mrb[0].mxu0 %v358
        %v526 = vpop.f32.mrb[0].mxu0
        %v527 = vadd.f32 0.0, %v526
        %v528 = vpop.f32.mrb[0].mxu0
        %v529 = vpop.f32.mrb[0].mxu0
        %v530 = vadd.f32 0.0, %v529
        %v531 = vpop.f32.mrb[0].mxu0
        %532 = vmatprep.mubr.bf16.mxu0 %v463
        %533 = vmatmul.mubr.bf16.gmra.mrb[0].mxu0 %v360
        %v534 = vpop.f32.mrb[0].mxu0
        %v535 = vadd.f32 0.0, %v534
        %v536 = vpop.f32.mrb[0].mxu0
        %v537 = vpop.f32.mrb[0].mxu0
        %v538 = vadd.f32 0.0, %v537
        %v539 = vpop.f32.mrb[0].mxu0
        %540 = vmatprep.mubr.bf16.mxu0 %v466
        %541 = vmatmul.mubr.bf16.gmra.mrb[0].mxu0 %v362
        %v542 = vpop.f32.mrb[0].mxu0
        %v543 = vadd.f32 0.0, %v542
        %v544 = vpop.f32.mrb[0].mxu0
        %v545 = vpop.f32.mrb[0].mxu0
        %v546 = vadd.f32 0.0, %v545
        %v547 = vpop.f32.mrb[0].mxu0
        %548 = vmatprep.mubr.bf16.mxu0 %v469
        %549 = vmatmul.mubr.bf16.gmra.mrb[0].mxu0 %v364
        %v550 = vpop.f32.mrb[0].mxu0
        %v551 = vadd.f32 0.0, %v550
        %v552 = vpop.f32.mrb[0].mxu0
        %v553 = vpop.f32.mrb[0].mxu0
        %v554 = vadd.f32 0.0, %v553
        %v555 = vpop.f32.mrb[0].mxu0
        %556 = vmatprep.mubr.bf16.mxu0 %v472
        %557 = vmatmul.mubr.bf16.gmra.mrb[0].mxu0 %v366
        %v558 = vpop.f32.mrb[0].mxu0
        %v559 = vadd.f32 0.0, %v558
        %v560 = vpop.f32.mrb[0].mxu0
        %v561 = vpop.f32.mrb[0].mxu0
        %v562 = vadd.f32 0.0, %v561
        %v563 = vpop.f32.mrb[0].mxu0
        %564 = vmatprep.mubr.bf16.mxu0 %v475
        %565 = vmatmul.mubr.bf16.gmra.mrb[0].mxu0 %v368
        %v566 = vpop.f32.mrb[0].mxu0
        %v567 = vadd.f32 0.0, %v566
        %v568 = vpop.f32.mrb[0].mxu0
        %v569 = vpop.f32.mrb[0].mxu0
        %v570 = vadd.f32 0.0, %v569
        %v571 = vpop.f32.mrb[0].mxu0
        %572 = vmatprep.mubr.bf16.mxu0 %v478
        %573 = vmatmul.mubr.bf16.gmra.mrb[0].mxu0 %v370
        %v574 = vpop.f32.mrb[0].mxu0
        %v575 = vadd.f32 0.0, %v574
        %v576 = vpop.f32.mrb[0].mxu0
        %v577 = vpop.f32.mrb[0].mxu0
        %v578 = vadd.f32 0.0, %v577
        %v579 = vpop.f32.mrb[0].mxu0
        %580 = vdwg.mxu0
        %v581 = vpack.c.bf16 %v522, %v519
        %v582 = vpack.c.bf16 %v530, %v527
        %v583 = vpack.c.bf16 %v538, %v535
        %v584 = vpack.c.bf16 %v546, %v543
        %v585 = vpack.c.bf16 %v554, %v551
        %v586 = vpack.c.bf16 %v562, %v559
        %v587 = vpack.c.bf16 %v570, %v567
        %v588 = vpack.c.bf16 %v578, %v575
        %v597 = vunpack.c.l.b16 %v581
        %v598 = vunpack.c.h.b16 %v581
        %v599 = vunpack.c.l.b16 %v582
        %v600 = vunpack.c.h.b16 %v582
        %v601 = vunpack.c.l.b16 %v583
        %v602 = vunpack.c.h.b16 %v583
        %v603 = vunpack.c.l.b16 %v584
        %v604 = vunpack.c.h.b16 %v584
        %v605 = vunpack.c.l.b16 %v585
        %v606 = vunpack.c.h.b16 %v585
        %v607 = vunpack.c.l.b16 %v586
        %v608 = vunpack.c.h.b16 %v586
        %v609 = vunpack.c.l.b16 %v587
        %v610 = vunpack.c.h.b16 %v587
        %v611 = vunpack.c.l.b16 %v588
        %v612 = vunpack.c.h.b16 %v588
        %v613 = vpack.c.b16 %v597, %v597
        %v614 = vpack.c.b16 %v598, %v598
        %v615 = vpack.c.b16 %v599, %v599
        %v616 = vpack.c.b16 %v600, %v600
        %v617 = vpack.c.b16 %v601, %v601
        %v618 = vpack.c.b16 %v602, %v602
        %v619 = vpack.c.b16 %v603, %v603
        %v620 = vpack.c.b16 %v604, %v604
        %v621 = vpack.c.b16 %v605, %v605
        %v622 = vpack.c.b16 %v606, %v606
        %v623 = vpack.c.b16 %v607, %v607
        %v624 = vpack.c.b16 %v608, %v608
        %v625 = vpack.c.b16 %v609, %v609
        %v626 = vpack.c.b16 %v610, %v610
        %v627 = vpack.c.b16 %v611, %v611
        %v628 = vpack.c.b16 %v612, %v612
        %645 = vst [vmem:[%s252] sm:$0xf] %v613
        %646 = vst [vmem:[%s252 + $0x4] sm:$0xf] %v614
        %647 = vst [vmem:[%s252 + $0x8] sm:$0xf] %v615
        %648 = vst [vmem:[%s252 + $0xc] sm:$0xf] %v616
        %649 = vst [vmem:[%s252 + $0x10] sm:$0xf] %v617
        %650 = vst [vmem:[%s252 + $0x14] sm:$0xf] %v618
        %651 = vst [vmem:[%s252 + $0x18] sm:$0xf] %v619
        %652 = vst [vmem:[%s252 + $0x1c] sm:$0xf] %v620
        %653 = vst [vmem:[%s252 + $0x20] sm:$0xf] %v621
        %654 = vst [vmem:[%s252 + $0x24] sm:$0xf] %v622
        %655 = vst [vmem:[%s252 + $0x28] sm:$0xf] %v623
        %656 = vst [vmem:[%s252 + $0x2c] sm:$0xf] %v624
        %657 = vst [vmem:[%s252 + $0x30] sm:$0xf] %v625
        %658 = vst [vmem:[%s252 + $0x34] sm:$0xf] %v626
        %659 = vst [vmem:[%s252 + $0x38] sm:$0xf] %v627
        %660 = vst [vmem:[%s252 + $0x3c] sm:$0xf] %v628
        %v661 = vadd.f32 %v519, %v522
        %v662 = vadd.f32 %v661, %v527
        %v663 = vadd.f32 %v662, %v530
        %v664 = vadd.f32 %v663, %v535
        %v665 = vadd.f32 %v664, %v538
        %v666 = vadd.f32 %v665, %v543
        %v667 = vadd.f32 %v666, %v546
        %v668 = vadd.f32 %v667, %v551
        %v669 = vadd.f32 %v668, %v554
        %v670 = vadd.f32 %v669, %v559
        %v671 = vadd.f32 %v670, %v562
        %v672 = vadd.f32 %v671, %v567
        %v673 = vadd.f32 %v672, %v570
        %v674 = vadd.f32 %v673, %v575
        %v675 = vadd.f32 %v674, %v578
        %v676 = vrot.slane %v675, 4
        %v677 = vadd.f32 %v675, %v676
        %v678 = vrot.slane %v677, 2
        %v679 = vadd.f32 %v677, %v678
        %v680 = vrot.slane %v679, 1
        %v681 = vadd.f32 %v679, %v680
        %v682 = vmul.f32 %v681, 0.0078125
        %v683 = vsub.f32 %v519, %v682
        %v684 = vsub.f32 %v522, %v682
        %v685 = vsub.f32 %v527, %v682
        %v686 = vsub.f32 %v530, %v682
        %v687 = vsub.f32 %v535, %v682
        %v688 = vsub.f32 %v538, %v682
        %v689 = vsub.f32 %v543, %v682
        %v690 = vsub.f32 %v546, %v682
        %v691 = vsub.f32 %v551, %v682
        %v692 = vsub.f32 %v554, %v682
        %v693 = vsub.f32 %v559, %v682
        %v694 = vsub.f32 %v562, %v682
        %v695 = vsub.f32 %v567, %v682
        %v696 = vsub.f32 %v570, %v682
        %v697 = vsub.f32 %v575, %v682
        %v698 = vsub.f32 %v578, %v682
        %v699 = vmul.f32 %v683, %v683
        %v700 = vmul.f32 %v684, %v684
        %v701 = vmul.f32 %v685, %v685
        %v702 = vmul.f32 %v686, %v686
        %v703 = vmul.f32 %v687, %v687
        %v704 = vmul.f32 %v688, %v688
        %v705 = vmul.f32 %v689, %v689
        %v706 = vmul.f32 %v690, %v690
        %v707 = vmul.f32 %v691, %v691
        %v708 = vmul.f32 %v692, %v692
        %v709 = vmul.f32 %v693, %v693
        %v710 = vmul.f32 %v694, %v694
        %v711 = vmul.f32 %v695, %v695
        %v712 = vmul.f32 %v696, %v696
        %v713 = vmul.f32 %v697, %v697
        %v714 = vmul.f32 %v698, %v698
        %v715 = vadd.f32 %v699, %v700
        %v716 = vadd.f32 %v715, %v701
        %v717 = vadd.f32 %v716, %v702
        %v718 = vadd.f32 %v717, %v703
        %v719 = vadd.f32 %v718, %v704
        %v720 = vadd.f32 %v719, %v705
        %v721 = vadd.f32 %v720, %v706
        %v722 = vadd.f32 %v721, %v707
        %v723 = vadd.f32 %v722, %v708
        %v724 = vadd.f32 %v723, %v709
        %v725 = vadd.f32 %v724, %v710
        %v726 = vadd.f32 %v725, %v711
        %v727 = vadd.f32 %v726, %v712
        %v728 = vadd.f32 %v727, %v713
        %v729 = vadd.f32 %v728, %v714
        %v730 = vrot.slane %v729, 4
        %v731 = vadd.f32 %v729, %v730
        %v732 = vrot.slane %v731, 2
        %v733 = vadd.f32 %v731, %v732
        %v734 = vrot.slane %v733, 1
        %v735 = vadd.f32 %v733, %v734
        %p736 = scmp.eq.s32.totalorder %s31, 0
        // Predicated region
        $region37: #{tpu_custom_call.1} parent=27 // pred_check
          %p737 = pneg %p736
        $region38: #{tpu_custom_call.1} parent=27 // pred_check_branch
          %739 = sbr.rel (%p737) target = $region40
        $region39: #{tpu_custom_call.1} parent=27 // pred_region
          %740 = vst [vmem:[%s258] sm:$0x1] 0.0
          %741 = vst [vmem:[%s264] sm:$0x1] 0.0
        $region40: #{tpu_custom_call.1} parent=27 // pred_fallthru
          _
        %s742 = scvt.s32.f32 %s31
        %s743 = sadd.f32 %s742, 1.0
        %v744 = vstv %s743
        %v745 = vrcp.pop %v744
        %s746 = vtos %v745
        %v747 = vld [vmem:[%s258] sm:$0x1]
        %v748 = vsub.f32 %v682, %v747
        %v749 = vstv %s746
        %v750 = vmul.f32 %v748, %v749
        %v751 = vadd.f32 %v747, %v750
        %752 = vst [vmem:[%s258] sm:$0x1] %v751
        %v753 = vld [vmem:[%s264] sm:$0x1]
        %v754 = vadd.f32 %v753, %v735
        %v755 = vmul.f32 %v748, %v748
        %s756 = smul.f32 %s742, 128.0
        %s757 = smul.f32 %s756, %s746
        %v758 = vstv %s757
        %v759 = vmul.f32 %v755, %v758
        %v760 = vadd.f32 %v754, %v759
        %761 = vst [vmem:[%s264] sm:$0x1] %v760
        %s762 = sand.u32 %s97, 1
        %s763 = scalar_lea.sflag [#allocation4], %s762
        %s764 = sand.u32 %s97, 1
        %s765 = smul.addr %s764, 64
        %s766 = scalar_lea.vmem [#allocation7], %s765
        %s767 = sand.u32 %s26, 1
        %s768 = scalar_lea.sflag [#allocation9], %s767
        %s769 = sand.u32 %s123, 1
        %s770 = scalar_lea.vmem [#allocation8], %s769
        %s771 = sand.u32 %s26, 1
        %s772 = scalar_lea.sflag [#allocation9], %s771
        %s773 = sand.u32 %s149, 1
        %s774 = scalar_lea.vmem [#allocation10], %s773
        // Predicated region
        $region41: #{tpu_custom_call.1} parent=27 // pred_check
          %p775 = pneg %p107
        $region42: #{tpu_custom_call.1} parent=27 // pred_check_branch
          %777 = sbr.rel (%p775) target = $region44
        $region43: #{tpu_custom_call.1} parent=27 // pred_region
          %s778 = smul.u32 16, %s31
          %s780 = ssub.s32 1024, 1024
          %781 = vsyncadd %s763, %s780
          %s782 = smul.addr %s30, 32
          %s783 = sadd.s32 %s778, %s782
          %s784 = smul.addr %s783, 64
          %s785 = scalar_lea.hbm %s2, %s784
          %s786 = sshll.u32 %s766, 4
          %s787 = int_to_ptr.vmem [resolvable:$true] %s786
          %792 = dma.vmem_to_hbm [thread:$0]  %s787, 1024, %s785, %s763, 64, 64, 4
        $region44: #{tpu_custom_call.1} parent=27 // pred_fallthru
          _
        // Predicated region
        $region45: #{tpu_custom_call.1} parent=27 // pred_check
          %p793 = pneg %p133
        $region46: #{tpu_custom_call.1} parent=27 // pred_check_branch
          %795 = sbr.rel (%p793) target = $region48
        $region47: #{tpu_custom_call.1} parent=27 // pred_region
          %s797 = ssub.s32 16, 16
          %798 = vsyncadd %s768, %s797
          %s799 = smul.addr %s30, 16
          %s800 = scalar_lea.hbm %s3, %s799
          %s802 = sshll.u32 %s770, 4
          %s803 = int_to_ptr.vmem [resolvable:$true] %s802
          %805 = dma.vmem_to_hbm [thread:$0]  %s803, 16, %s800, %s768
        $region48: #{tpu_custom_call.1} parent=27 // pred_fallthru
          _
        // Predicated region
        $region49: #{tpu_custom_call.1} parent=27 // pred_check
          %p806 = pneg %p159
        $region50: #{tpu_custom_call.1} parent=27 // pred_check_branch
          %808 = sbr.rel (%p806) target = $region52
        $region51: #{tpu_custom_call.1} parent=27 // pred_region
          %s810 = ssub.s32 16, 16
          %811 = vsyncadd %s772, %s810
          %s812 = smul.addr %s30, 16
          %s813 = scalar_lea.hbm %s4, %s812
          %s815 = sshll.u32 %s774, 4
          %s816 = int_to_ptr.vmem [resolvable:$true] %s815
          %818 = dma.vmem_to_hbm [thread:$0]  %s816, 16, %s813, %s772
        $region52: #{tpu_custom_call.1} parent=27 // pred_fallthru
          _
      $region28: #{tpu_custom_call.1} parent=5 // pred_fallthru
        _
      %p819 = scmp.le.s32.totalorder 2, %s21
      // Predicated region
      $region53: #{tpu_custom_call.1} parent=5 // pred_check
        %p820 = pneg %p819
      $region54: #{tpu_custom_call.1} parent=5 // pred_check_branch
        %822 = sbr.rel (%p820) target = $region56
      $region55: #{tpu_custom_call.1} parent=5 // pred_region
        %s823 = ssub.s32 %s21, 2
        // Predicated region
        $region57: #{tpu_custom_call.1} parent=55 // pred_check
          %p824 = pneg %p113
        $region58: #{tpu_custom_call.1} parent=55 // pred_check_branch
          %826 = sbr.rel (%p824) target = $region60
        $region59: #{tpu_custom_call.1} parent=55 // pred_region
          %s827 = sand.u32 %s98, 1
          %s828 = scalar_lea.sflag [#allocation4], %s827
          %s829 = sand.u32 %s98, 1
          %s830 = smul.addr %s829, 64
          %s831 = scalar_lea.vmem [#allocation7], %s830
          %832 = dma.done %s828, 1024
        $region60: #{tpu_custom_call.1} parent=55 // pred_fallthru
          _
        // Predicated region
        $region61: #{tpu_custom_call.1} parent=55 // pred_check
          %p833 = pneg %p139
        $region62: #{tpu_custom_call.1} parent=55 // pred_check_branch
          %835 = sbr.rel (%p833) target = $region64
        $region63: #{tpu_custom_call.1} parent=55 // pred_region
          %s836 = sand.u32 %s27, 1
          %s837 = scalar_lea.sflag [#allocation9], %s836
          %s838 = sand.u32 %s124, 1
          %s839 = scalar_lea.vmem [#allocation8], %s838
          %840 = dma.done %s837, 16
        $region64: #{tpu_custom_call.1} parent=55 // pred_fallthru
          _
        // Predicated region
        $region65: #{tpu_custom_call.1} parent=55 // pred_check
          %p841 = pneg %p165
        $region66: #{tpu_custom_call.1} parent=55 // pred_check_branch
          %843 = sbr.rel (%p841) target = $region68
        $region67: #{tpu_custom_call.1} parent=55 // pred_region
          %s844 = sand.u32 %s27, 1
          %s845 = scalar_lea.sflag [#allocation9], %s844
          %s846 = sand.u32 %s150, 1
          %s847 = scalar_lea.vmem [#allocation10], %s846
          %848 = dma.done %s845, 16
        $region68: #{tpu_custom_call.1} parent=55 // pred_fallthru
          _
      $region56: #{tpu_custom_call.1} parent=5 // pred_fallthru
        _
    $region6: #{tpu_custom_call.1} parent=1 // loop_footer
      %s25 = sadd.s32 1, %s21
    $region7: #{tpu_custom_call.1} parent=1 // loop_footer_branch
      %20 = sbr.rel target = $region3
    $region8: #{tpu_custom_call.1} parent=1 // loop_exit
      _
    %849 = vsyncpa [#allocation3], 1
    %s850 = scalar_lea.sflag [#allocation3], 1
    %851 = vsyncpa %s850, 1
    %852 = vsyncpa [#allocation6], 1
    %853 = vsyncpa [#allocation4], 1
    %s854 = scalar_lea.sflag [#allocation4], 1
    %855 = vsyncpa %s854, 1
    %856 = vsyncpa [#allocation9], 1
    %s857 = scalar_lea.sflag [#allocation9], 1
    %858 = vsyncpa %s857, 1

</llo_original>
